<compile_context>
chip_gen: v6e
topology: v6e:2x2x1
jax: 0.10.0
libtpu: 0.0.40
codegen_flags: <defaults>
</compile_context>

<pallas_src>
import jax
import jax.numpy as jnp
from jax.experimental import pallas as pl
from jax.experimental.pallas import tpu as pltpu

_LANE = 128
_TARGET_BLOCK_BYTES = 2 << 20  # ~2 MiB per block buffer


def _growth_kernel(params_ref, x_ref, o_ref):
    # params_ref: SMEM f32[2] = [m, c] with c = -1/(2*s^2) precomputed in the
    # wrapper (no divide in the kernel).  x_ref/o_ref: VMEM (tile_rows, 128).
    m = params_ref[0]
    c = params_ref[1]
    x = x_ref[...].astype(jnp.float32)
    d = x - m
    o_ref[...] = (2.0 * jnp.exp(d * d * c) - 1.0).astype(o_ref.dtype)


def _round_up(a, b):
    return -(-a // b) * b


def custom_gf_forward(x, m, s):
    """Applies G(x) = 2*exp(-(x-m)^2 / (2 s^2)) - 1 elementwise via Pallas.

    x: any-shape float array (e.g. NCHW Lenia world).  m, s: scalar params.
    """
    orig_shape = x.shape
    orig_dtype = x.dtype

    # Keep narrow dtypes in HBM; everything else goes through f32.
    if orig_dtype in (jnp.float32, jnp.bfloat16, jnp.float16):
        io_dtype = orig_dtype
    else:
        io_dtype = jnp.float32
    itemsize = jnp.dtype(io_dtype).itemsize
    # Sublane alignment: 8 rows for 4-byte dtypes, 16 rows for 2-byte dtypes.
    row_align = max(8, 32 // itemsize)

    xf = x.astype(io_dtype).reshape(-1)
    n = xf.shape[0]
    rows_raw = -(-n // _LANE)

    # Largest tile that keeps one block <= ~2 MiB (aligned down to row_align).
    max_tile_rows = max(
        row_align,
        (_TARGET_BLOCK_BYTES // (_LANE * itemsize)) // row_align * row_align,
    )
    # Prefer >= 4 grid steps when the input is big enough (v7x megacore +
    # pipeline warm-up); tiny inputs just collapse to 1-2 aligned tiles.
    quarter = _round_up(-(-rows_raw // 4), row_align)
    tile_rows = max(row_align, min(max_tile_rows, quarter))

    # Single pad pass up to a multiple of the chosen tile (no-op if aligned).
    rows = _round_up(rows_raw, tile_rows)
    n_pad = rows * _LANE
    if n_pad != n:
        xf = jnp.pad(xf, (0, n_pad - n))
    x2d = xf.reshape(rows, _LANE)
    grid = (rows // tile_rows,)

    # Hoisted scalar math (single SMEM array): [m, c] with c = -1/(2*s^2).
    m_f32 = jnp.asarray(m, jnp.float32).reshape(())
    s_f32 = jnp.asarray(s, jnp.float32).reshape(())
    params = jnp.stack([m_f32, -0.5 / (s_f32 * s_f32)])

    n_elems = rows * _LANE
    cost = pl.CostEstimate(
        flops=5 * n_elems,
        transcendentals=n_elems,
        bytes_accessed=2 * n_elems * itemsize,  # read + write
    )

    out2d = pl.pallas_call(
        _growth_kernel,
        out_shape=jax.ShapeDtypeStruct((rows, _LANE), io_dtype),
        grid_spec=pltpu.PrefetchScalarGridSpec(
            num_scalar_prefetch=0,
            grid=grid,
            in_specs=[
                pl.BlockSpec(memory_space=pltpu.SMEM),           # [m, c]
                pl.BlockSpec((tile_rows, _LANE), lambda i: (i, 0)),
            ],
            out_specs=pl.BlockSpec((tile_rows, _LANE), lambda i: (i, 0)),
        ),
        compiler_params=pltpu.CompilerParams(
            dimension_semantics=("parallel",),
        ),
        cost_estimate=cost,
    )(params, x2d)

    out = out2d.reshape(-1)
    if n_pad != n:
        out = out[:n]
    return out.reshape(orig_shape).astype(orig_dtype)


def _reference(x, m, s):
    xf = x.astype(jnp.float32)
    d = xf - jnp.float32(m)
    s32 = jnp.float32(s)
    return (2.0 * jnp.exp(-(d * d) / (2.0 * s32 * s32)) - 1.0).astype(x.dtype)


if __name__ == "__main__":
    key = jax.random.PRNGKey(0)
    kx, km, ks = jax.random.split(key, 3)

    # Deterministic "parameters" (nn.Parameter m, s in the PyTorch module).
    m = jnp.float32(0.15) + 0.01 * jax.random.normal(km, ())
    s = jnp.float32(0.015) + 0.001 * jax.random.normal(ks, ())

    # Example input: NCHW, values in [0, 1] as Lenia world states are.
    x = jax.random.uniform(kx, (2, 4, 16, 16), dtype=jnp.float32)

    y = custom_gf_forward(x, m, s)
    y = jax.block_until_ready(y)
    y_ref = _reference(x, m, s)
    assert y.shape == x.shape and y.dtype == x.dtype
    assert jnp.max(jnp.abs(y - y_ref)) < 1e-5

    # Narrow-dtype path (bf16 kept end-to-end in HBM, f32 math in-kernel).
    x_bf16 = x.astype(jnp.bfloat16)
    y_bf16 = jax.block_until_ready(custom_gf_forward(x_bf16, m, s))
    y_bf16_ref = _reference(x_bf16, m, s)
    assert y_bf16.shape == x_bf16.shape and y_bf16.dtype == jnp.bfloat16
    assert jnp.max(
        jnp.abs(y_bf16.astype(jnp.float32) - y_bf16_ref.astype(jnp.float32))
    ) < 2e-2

    # Non-128-aligned / larger shape exercises the pad + multi-step grid path.
    x_big = jax.random.uniform(kx, (3, 5, 33, 47), dtype=jnp.float32)
    y_big = jax.block_until_ready(custom_gf_forward(x_big, m, s))
    assert jnp.max(jnp.abs(y_big - _reference(x_big, m, s))) < 1e-5

    print("KERNEL_OK")
</pallas_src>

<mosaic_0001>
module attributes {stable_mosaic.version = 11 : i64} {
  func.func @_growth_kernel(%arg0: i32, %arg1: memref<2xf32, #tpu.memory_space<smem>>, %arg2: memref<8x128xf32, #tpu.memory_space<vmem>>, %arg3: memref<8x128xf32, #tpu.memory_space<vmem>>) attributes {dimension_semantics = [#tpu.dimension_semantics<parallel>], iteration_bounds = array<i64: 2>, scalar_prefetch = 0 : i64, scratch_operands = 0 : i64, tpu.core_type = #tpu.core_type<tc>, window_params = [{transform_indices = @transform_0, window_bounds = array<i64: 2>}, {transform_indices = @transform_1, window_bounds = array<i64: 8, 128>}, {transform_indices = @transform_2, window_bounds = array<i64: 8, 128>}]} {
    %c0 = arith.constant 0 : index
    %0 = memref.load %arg1[%c0] : memref<2xf32, #tpu.memory_space<smem>>
    %c1 = arith.constant 1 : index
    %1 = memref.load %arg1[%c1] : memref<2xf32, #tpu.memory_space<smem>>
    %c0_0 = arith.constant 0 : index
    %c0_1 = arith.constant 0 : index
    %2 = vector.load %arg2[%c0_0, %c0_1] : memref<8x128xf32, #tpu.memory_space<vmem>>, vector<8x128xf32>
    %3 = vector.broadcast %0 : f32 to vector<8x128xf32>
    %4 = arith.subf %2, %3 : vector<8x128xf32>
    %5 = arith.mulf %4, %4 : vector<8x128xf32>
    %6 = vector.broadcast %1 : f32 to vector<8x128xf32>
    %7 = arith.mulf %5, %6 : vector<8x128xf32>
    %8 = math.exp %7 : vector<8x128xf32>
    %cst = arith.constant 2.000000e+00 : f32
    %9 = vector.broadcast %cst : f32 to vector<8x128xf32>
    %10 = arith.mulf %9, %8 : vector<8x128xf32>
    %cst_2 = arith.constant 1.000000e+00 : f32
    %11 = vector.broadcast %cst_2 : f32 to vector<8x128xf32>
    %12 = arith.subf %10, %11 : vector<8x128xf32>
    %c0_3 = arith.constant 0 : index
    %c0_4 = arith.constant 0 : index
    %13 = vector.load %arg3[%c0_3, %c0_4] : memref<8x128xf32, #tpu.memory_space<vmem>>, vector<8x128xf32>
    tpu.vector_store %arg3[%c0_3, %c0_4], %12 {strides = array<i32>} : memref<8x128xf32, #tpu.memory_space<vmem>>, vector<8x128xf32>,
    return
  }
  func.func @transform_0(%arg0: i32) -> i32 {
    %c0_i32 = arith.constant 0 : i32
    %c0_i32_0 = arith.constant 0 : i32
    return %c0_i32 : i32
  }
  func.func @transform_1(%arg0: i32) -> (i32, i32) {
    %c0_i32 = arith.constant 0 : i32
    %c0_i32_0 = arith.constant 0 : i32
    return %arg0, %c0_i32 : i32, i32
  }
  func.func @transform_2(%arg0: i32) -> (i32, i32) {
    %c0_i32 = arith.constant 0 : i32
    %c0_i32_0 = arith.constant 0 : i32
    return %arg0, %c0_i32 : i32, i32
  }
}

</mosaic_0001>

<llo_original>
// kernel: tpu_custom_call.1
$region0: #{tpu_custom_call.1}
  #allocation0 [shape = 'u32[]', space=smem, size = 0x4, offset = 0x4, fixed_abs, tag = 'smem constant byte address 0x4 - core index']
  #allocation1 [shape = 'u32[144,128]{1,0:T(1,128)}', space=vmem, size = 0x12000, scoped, tag = 'internal scratch']
  %s0 = inlined_call_operand.hbm [shape: f32[2], index: 0, kind: input, shape index: {}]
  %s1 = inlined_call_operand.hbm [shape: f32[16,128], index: 1, kind: input, shape index: {}]
  %s2 = inlined_call_operand.hbm [shape: f32[16,128], index: 2, kind: output, shape index: {}]
  %s3 = sld [smem:[#allocation0]]
  $region49: #{tpu_custom_call.1} parent=0
    _
  %s5 = ssub.s32 1, %s3
  %s6 = scalar_select 0, %s5, %s3
  $region1: #{tpu_custom_call.1} parent=0
    #allocation2 [shape = 'u8[512]{0}', space=smem, size = 0x200, scoped, tag = 'input window, operand 0, single buffered']
    #allocation3 [shape = 's32[2]{0}', space=sflag, size = 0x8, scoped, tag = 'scoped memory for tpu_custom_call.1']
    #allocation4 [shape = 's32[2]{0}', space=sflag, size = 0x8, scoped, tag = 'scoped memory for tpu_custom_call.1']
    #allocation5 [shape = 's32[2]{0}', space=sflag, size = 0x8, scoped, tag = 'scoped memory for tpu_custom_call.1']
    #allocation6 [shape = 'u8[8192]{0}', space=vmem, size = 0x2000, scoped, tag = 'input window, operand 1']
    #allocation7 [shape = 'u8[8192]{0}', space=vmem, size = 0x2000, scoped, tag = 'output window, operand 0']
    %7 = vsyncpa [#allocation5], 0
    %8 = vsyncpa [#allocation3], 0
    %s9 = scalar_lea.sflag [#allocation3], 1
    %10 = vsyncpa %s9, 0
    %11 = vsyncpa [#allocation4], 0
    %s12 = scalar_lea.sflag [#allocation4], 1
    %13 = vsyncpa %s12, 0
    loop: start=0, step=1, limit=4
    $region2: #{tpu_custom_call.1} parent=1 // loop_pre_header
      _
    $region3: #{tpu_custom_call.1} parent=1 // loop_header
      %s15 = sphi 0, %s19
      %p16 = scmp.ge.s32.totalorder %s15, 4
      %s23 = sphi 0, %s23
      %s25 = sphi 0, %s23
      %s26 = sphi 0, %s25
      %s40 = sphi 0, %s26
      %s46 = sphi 0, %s48
      %s49 = sphi 0, %s46
      %s50 = sphi 0, %s49
      %s66 = sphi 0, %s50
      %s72 = sphi 0, %s74
      %s75 = sphi 0, %s72
      %s76 = sphi 0, %s75
      %s92 = sphi 0, %s76
    $region4: #{tpu_custom_call.1} parent=1 // loop_header_branch
      %18 = sbr.rel (%p16) target = $region8
    $region5: #{tpu_custom_call.1} parent=1 // loop_body
      %s20 = ssub.s32 %s15, 1
      %s21 = ssub.s32 %s15, 2
      %s22 = sadd.s32 %s15, 1
      %s24 = sadd.s32 %s23, 1
      %p27 = scmp.eq.s32.totalorder %s15, 1
      %p28 = scmp.ne.s32.totalorder %s23, %s25
      %p29 = scmp.eq.s32.totalorder %s15, 0
      %p30 = por %p28, %p29
      %p31 = scmp.ne.s32.totalorder %s23, %s25
      %p32 = scmp.eq.s32.totalorder %s20, 1
      %p33 = por %p31, %p32
      %p34 = scmp.ne.s32.totalorder %s25, %s26
      %p35 = scmp.eq.s32.totalorder %s20, 0
      %p36 = por %p34, %p35
      %p37 = scmp.ne.s32.totalorder %s25, %s26
      %p38 = scmp.eq.s32.totalorder %s21, 1
      %p39 = por %p37, %p38
      %p41 = scmp.ne.s32.totalorder %s26, %s40
      %p42 = scmp.eq.s32.totalorder %s21, 0
      %p43 = por %p41, %p42
      %s44 = ssub.s32 %s15, %s22
      %p45 = scmp.eq.s32.totalorder %s44, 0
      %s47 = sadd.s32 %s46, 1
      %s48 = scalar_select %p45, %s46, %s47
      %p51 = pneg %p45
      %p52 = scmp.eq.s32.totalorder %s15, 1
      %p53 = por %p51, %p52
      %p54 = scmp.ne.s32.totalorder %s46, %s49
      %p55 = scmp.eq.s32.totalorder %s15, 0
      %p56 = por %p54, %p55
      %p57 = scmp.ne.s32.totalorder %s46, %s49
      %p58 = scmp.eq.s32.totalorder %s20, 1
      %p59 = por %p57, %p58
      %p60 = scmp.ne.s32.totalorder %s49, %s50
      %p61 = scmp.eq.s32.totalorder %s20, 0
      %p62 = por %p60, %p61
      %p63 = scmp.ne.s32.totalorder %s49, %s50
      %p64 = scmp.eq.s32.totalorder %s21, 1
      %p65 = por %p63, %p64
      %p67 = scmp.ne.s32.totalorder %s50, %s66
      %p68 = scmp.eq.s32.totalorder %s21, 0
      %p69 = por %p67, %p68
      %s70 = ssub.s32 %s15, %s22
      %p71 = scmp.eq.s32.totalorder %s70, 0
      %s73 = sadd.s32 %s72, 1
      %s74 = scalar_select %p71, %s72, %s73
      %p77 = pneg %p71
      %p78 = scmp.eq.s32.totalorder %s15, 1
      %p79 = por %p77, %p78
      %p80 = scmp.ne.s32.totalorder %s72, %s75
      %p81 = scmp.eq.s32.totalorder %s15, 0
      %p82 = por %p80, %p81
      %p83 = scmp.ne.s32.totalorder %s72, %s75
      %p84 = scmp.eq.s32.totalorder %s20, 1
      %p85 = por %p83, %p84
      %p86 = scmp.ne.s32.totalorder %s75, %s76
      %p87 = scmp.eq.s32.totalorder %s20, 0
      %p88 = por %p86, %p87
      %p89 = scmp.ne.s32.totalorder %s75, %s76
      %p90 = scmp.eq.s32.totalorder %s21, 1
      %p91 = por %p89, %p90
      %p93 = scmp.ne.s32.totalorder %s76, %s92
      %p94 = scmp.eq.s32.totalorder %s21, 0
      %p95 = por %p93, %p94
      %p96 = scmp.le.s32.totalorder 1, %s15
      %p97 = scmp.lt.s32.totalorder %s15, 3
      %p98 = pnand %p96, %p97
      %p99 = pneg %p98
      // Predicated region
      $region9: #{tpu_custom_call.1} parent=5 // pred_check
        _
      $region10: #{tpu_custom_call.1} parent=5 // pred_check_branch
        %101 = sbr.rel (%p98) target = $region12
      $region11: #{tpu_custom_call.1} parent=5 // pred_region
        %s102 = ssub.s32 %s15, 1
        // Predicated region
        $region13: #{tpu_custom_call.1} parent=11 // pred_check
          %p103 = pneg %p36
        $region14: #{tpu_custom_call.1} parent=11 // pred_check_branch
          %105 = sbr.rel (%p103) target = $region16
        $region15: #{tpu_custom_call.1} parent=11 // pred_region
          %s107 = ssub.s32 16, 16
          %108 = vsyncadd [#allocation5], %s107
          %111 = dma.hbm_to_smem %s0, 16, [#allocation2], [#allocation5]
        $region16: #{tpu_custom_call.1} parent=11 // pred_fallthru
          _
      $region12: #{tpu_custom_call.1} parent=5 // pred_fallthru
        _
      %p112 = scmp.lt.s32.totalorder %s15, 2
      // Predicated region
      $region17: #{tpu_custom_call.1} parent=5 // pred_check
        %p113 = pneg %p112
      $region18: #{tpu_custom_call.1} parent=5 // pred_check_branch
        %115 = sbr.rel (%p113) target = $region20
      $region19: #{tpu_custom_call.1} parent=5 // pred_region
        // Predicated region
        $region21: #{tpu_custom_call.1} parent=19 // pred_check
          %p116 = pneg %p56
        $region22: #{tpu_custom_call.1} parent=19 // pred_check_branch
          %118 = sbr.rel (%p116) target = $region24
        $region23: #{tpu_custom_call.1} parent=19 // pred_region
          %s119 = sand.u32 %s46, 1
          %s120 = scalar_lea.sflag [#allocation3], %s119
          %s121 = sand.u32 %s46, 1
          %s122 = smul.addr %s121, 8
          %s123 = scalar_lea.vmem [#allocation6], %s122
          %s125 = ssub.s32 128, 128
          %126 = vsyncadd %s120, %s125
          %s127 = smul.addr %s15, 128
          %s128 = scalar_lea.hbm %s1, %s127
          %s130 = sshll.u32 %s123, 4
          %s131 = int_to_ptr.vmem [resolvable:$true] %s130
          %133 = dma.hbm_to_vmem [thread:$0]  %s128, 128, %s131, %s120
        $region24: #{tpu_custom_call.1} parent=19 // pred_fallthru
          _
      $region20: #{tpu_custom_call.1} parent=5 // pred_fallthru
        _
      %p134 = scmp.le.s32.totalorder 1, %s15
      %p135 = scmp.lt.s32.totalorder %s15, 3
      %p136 = pnand %p134, %p135
      %p137 = pneg %p136
      // Predicated region
      $region25: #{tpu_custom_call.1} parent=5 // pred_check
        _
      $region26: #{tpu_custom_call.1} parent=5 // pred_check_branch
        %139 = sbr.rel (%p136) target = $region28
      $region27: #{tpu_custom_call.1} parent=5 // pred_region
        %s140 = ssub.s32 %s15, 1
        // Predicated region
        $region29: #{tpu_custom_call.1} parent=27 // pred_check
          %p141 = pneg %p36
        $region30: #{tpu_custom_call.1} parent=27 // pred_check_branch
          %143 = sbr.rel (%p141) target = $region32
        $region31: #{tpu_custom_call.1} parent=27 // pred_region
          %144 = dma.done [#allocation5], 16
        $region32: #{tpu_custom_call.1} parent=27 // pred_fallthru
          _
        %s145 = sand.u32 %s49, 1
        %s146 = scalar_lea.sflag [#allocation3], %s145
        %s147 = sand.u32 %s49, 1
        %s148 = smul.addr %s147, 8
        %s149 = scalar_lea.vmem [#allocation6], %s148
        // Predicated region
        $region33: #{tpu_custom_call.1} parent=27 // pred_check
          %p150 = pneg %p62
        $region34: #{tpu_custom_call.1} parent=27 // pred_check_branch
          %152 = sbr.rel (%p150) target = $region36
        $region35: #{tpu_custom_call.1} parent=27 // pred_region
          %153 = dma.done %s146, 128
        $region36: #{tpu_custom_call.1} parent=27 // pred_fallthru
          _
        %154 = sfence
        %p155 = pneg %p36
        %p156 = pneg %p33
        %s157 = sand.u32 %s49, 1
        %s158 = scalar_lea.sflag [#allocation3], %s157
        %s159 = sand.u32 %s49, 1
        %s160 = smul.addr %s159, 8
        %s161 = scalar_lea.vmem [#allocation6], %s160
        %p162 = pneg %p62
        %p163 = pneg %p59
        %p164 = pneg %p88
        %p165 = pneg %p85
        %s166 = sand.u32 %s75, 1
        %s167 = scalar_lea.sflag [#allocation4], %s166
        %s168 = sand.u32 %s75, 1
        %s169 = smul.addr %s168, 8
        %s170 = scalar_lea.vmem [#allocation7], %s169
        %s171 = sld [smem:[#allocation2]]
        %s172 = sld [smem:[#allocation2 + $0x1]]
        %v173 = vld [vmem:[%s149] sm:$0xff]
        %v174 = vstv %s171
        %v175 = vsub.f32 %v173, %v174
        %v176 = vmul.f32 %v175, %v175
        %v177 = vstv %s172
        %v178 = vmul.f32 %v176, %v177
        %v179 = vmul.f32 %v178, 1.442695
        %v180 = vpow.pop %v179
        %v181 = vmul.f32 %v180, 2.0
        %v182 = vsub.f32 %v181, 1.0
        %183 = vst [vmem:[%s170] sm:$0xff] %v182
        %s184 = sand.u32 %s75, 1
        %s185 = scalar_lea.sflag [#allocation4], %s184
        %s186 = sand.u32 %s75, 1
        %s187 = smul.addr %s186, 8
        %s188 = scalar_lea.vmem [#allocation7], %s187
        // Predicated region
        $region37: #{tpu_custom_call.1} parent=27 // pred_check
          %p189 = pneg %p85
        $region38: #{tpu_custom_call.1} parent=27 // pred_check_branch
          %191 = sbr.rel (%p189) target = $region40
        $region39: #{tpu_custom_call.1} parent=27 // pred_region
          %s193 = ssub.s32 128, 128
          %194 = vsyncadd %s185, %s193
          %s195 = smul.addr %s20, 128
          %s196 = scalar_lea.hbm %s2, %s195
          %s198 = sshll.u32 %s188, 4
          %s199 = int_to_ptr.vmem [resolvable:$true] %s198
          %201 = dma.vmem_to_hbm [thread:$0]  %s199, 128, %s196, %s185
        $region40: #{tpu_custom_call.1} parent=27 // pred_fallthru
          _
      $region28: #{tpu_custom_call.1} parent=5 // pred_fallthru
        _
      %p202 = scmp.le.s32.totalorder 2, %s15
      // Predicated region
      $region41: #{tpu_custom_call.1} parent=5 // pred_check
        %p203 = pneg %p202
      $region42: #{tpu_custom_call.1} parent=5 // pred_check_branch
        %205 = sbr.rel (%p203) target = $region44
      $region43: #{tpu_custom_call.1} parent=5 // pred_region
        %s206 = ssub.s32 %s15, 2
        // Predicated region
        $region45: #{tpu_custom_call.1} parent=43 // pred_check
          %p207 = pneg %p91
        $region46: #{tpu_custom_call.1} parent=43 // pred_check_branch
          %209 = sbr.rel (%p207) target = $region48
        $region47: #{tpu_custom_call.1} parent=43 // pred_region
          %s210 = sand.u32 %s76, 1
          %s211 = scalar_lea.sflag [#allocation4], %s210
          %s212 = sand.u32 %s76, 1
          %s213 = smul.addr %s212, 8
          %s214 = scalar_lea.vmem [#allocation7], %s213
          %215 = dma.done %s211, 128
        $region48: #{tpu_custom_call.1} parent=43 // pred_fallthru
          _
      $region44: #{tpu_custom_call.1} parent=5 // pred_fallthru
        _
    $region6: #{tpu_custom_call.1} parent=1 // loop_footer
      %s19 = sadd.s32 1, %s15
    $region7: #{tpu_custom_call.1} parent=1 // loop_footer_branch
      %14 = sbr.rel target = $region3
    $region8: #{tpu_custom_call.1} parent=1 // loop_exit
      _
    %216 = vsyncpa [#allocation3], 1
    %s217 = scalar_lea.sflag [#allocation3], 1
    %218 = vsyncpa %s217, 1
    %219 = vsyncpa [#allocation4], 1
    %s220 = scalar_lea.sflag [#allocation4], 1
    %221 = vsyncpa %s220, 1
    %222 = vsyncpa [#allocation5], 1
    %s223 = scalar_lea.sflag [#allocation5], 1
    %224 = vsyncpa %s223, 1

</llo_original>
